<compile_context>
chip_gen: v5e
topology: v5e:2x2
jax: 0.10.0
libtpu: 0.0.40
codegen_flags: <defaults>
</compile_context>

<pallas_src>
import jax
import jax.numpy as jnp
from jax.experimental import pallas as pl
from jax.experimental.pallas import tpu as pltpu

LANES = 128            # vreg lane width; last dim of the lane-dense slab
MAX_TILE_ROWS = 4096   # (4096, 128) f32 block = 2 MiB; 2 bufs x (in + out) = 8 MiB VMEM
SMALL_N = 1024         # below this, plain fused XLA beats any kernel (launch overhead)


def _linreg_kernel(params_ref, x_ref, o_ref):
    # params_ref: (2,) f32 in SMEM (scalar prefetch): [w, b].
    # x_ref / o_ref: (tile_r, 128) f32 tiles in VMEM (full 128-lane unmasked stores).
    o_ref[...] = x_ref[...] * params_ref[0] + params_ref[1]   # fused multiply-add on the VPU


def linreg_forward(x: jax.Array, weight: jax.Array, bias: jax.Array,
                   *, max_tile_rows: int = MAX_TILE_ROWS) -> jax.Array:
    """Equivalent of LinRegModeV2.forward(x) = x @ weight.T + bias.

    x:      (N, 1) float32
    weight: (1, 1) float32   (PyTorch nn.Linear weight shape: (out, in))
    bias:   (1,)   float32
    returns (N, 1) float32
    """
    n = x.shape[0]
    w = weight.reshape(()).astype(jnp.float32)
    b = bias.reshape(()).astype(jnp.float32)
    xf = x.astype(jnp.float32)

    # Ragged or tiny batches: fused XLA already moves the minimum bytes
    # (1 read + 1 write) with no repack copies and no kernel launch overhead.
    if n < SMALL_N or n % LANES != 0:
        return (xf * w + b).astype(jnp.float32)

    # --- zero-copy lane-dense view: (N, 1) -> (N//128, 128) is a pure bitcast ---
    rows = n // LANES
    slab = xf.reshape(rows, LANES)

    tile_r = min(max_tile_rows, ((rows + 7) // 8) * 8)   # sublane-aligned block rows
    grid = (pl.cdiv(rows, tile_r),)                       # no round-up: edge block is masked

    params = jnp.stack([w, b])                            # (2,) -> SMEM via scalar prefetch

    out_slab = pl.pallas_call(
        _linreg_kernel,
        out_shape=jax.ShapeDtypeStruct((rows, LANES), jnp.float32),
        grid_spec=pltpu.PrefetchScalarGridSpec(
            num_scalar_prefetch=1,
            grid=grid,
            in_specs=[pl.BlockSpec((tile_r, LANES), lambda i, p: (i, 0))],
            out_specs=pl.BlockSpec((tile_r, LANES), lambda i, p: (i, 0)),
        ),
        compiler_params=pltpu.CompilerParams(
            dimension_semantics=("parallel",),   # shard row tiles across v7x's 2 TCs
        ),
    )(params, slab)

    # (rows, 128) -> (N, 1): pure bitcast reshape, no extra HBM pass.
    return out_slab.reshape(n, 1)


if __name__ == "__main__":
    key = jax.random.PRNGKey(0)

    # Deterministic parameters (same shapes as nn.Linear(1, 1)).
    weight = jnp.array([[0.7]], dtype=jnp.float32)   # (out_features, in_features)
    bias = jnp.array([0.3], dtype=jnp.float32)       # (out_features,)

    def ref_fn(x):
        return x @ weight.T + bias

    # 1) Kernel path, zero-copy lane-dense view (N multiple of 128, single block).
    n1 = 4096
    x1 = jax.random.normal(key, (n1, 1), dtype=jnp.float32)
    y1 = jax.block_until_ready(linreg_forward(x1, weight, bias))
    assert y1.shape == (n1, 1)
    assert jnp.allclose(y1, ref_fn(x1), atol=1e-6, rtol=1e-6)

    # 2) Kernel path with a small tile to exercise the multi-block grid and the
    #    masked partial edge block (rows=20, tile_r=8 -> 3 blocks, last one partial).
    n2 = 2560
    x2 = jax.random.normal(jax.random.PRNGKey(1), (n2, 1), dtype=jnp.float32)
    y2 = jax.block_until_ready(linreg_forward(x2, weight, bias, max_tile_rows=8))
    assert y2.shape == (n2, 1)
    assert jnp.allclose(y2, ref_fn(x2), atol=1e-6, rtol=1e-6)

    # 3) Ragged N -> fused XLA fallback (minimum HBM traffic, review-endorsed).
    n3 = 1000
    x3 = jax.random.normal(jax.random.PRNGKey(2), (n3, 1), dtype=jnp.float32)
    y3 = jax.block_until_ready(linreg_forward(x3, weight, bias))
    assert y3.shape == (n3, 1)
    assert jnp.allclose(y3, ref_fn(x3), atol=1e-6, rtol=1e-6)

    # 4) Tiny N -> fallback.
    n4 = 8
    x4 = jax.random.normal(jax.random.PRNGKey(3), (n4, 1), dtype=jnp.float32)
    y4 = jax.block_until_ready(linreg_forward(x4, weight, bias))
    assert y4.shape == (n4, 1)
    assert jnp.allclose(y4, ref_fn(x4), atol=1e-6, rtol=1e-6)

    print("KERNEL_OK")
</pallas_src>

<mosaic_0001>
module attributes {stable_mosaic.version = 11 : i64} {
  func.func @_linreg_kernel(%arg0: i32, %arg1: memref<2xf32, #tpu.memory_space<smem>>, %arg2: memref<32x128xf32, #tpu.memory_space<vmem>>, %arg3: memref<32x128xf32, #tpu.memory_space<vmem>>) attributes {dimension_semantics = [#tpu.dimension_semantics<parallel>], iteration_bounds = array<i64: 1>, scalar_prefetch = 1 : i64, scratch_operands = 0 : i64, tpu.core_type = #tpu.core_type<tc>, window_params = [{transform_indices = @transform_0, window_bounds = array<i64: 32, 128>}, {transform_indices = @transform_1, window_bounds = array<i64: 32, 128>}]} {
    %c0 = arith.constant 0 : index
    %c0_0 = arith.constant 0 : index
    %0 = vector.load %arg2[%c0, %c0_0] : memref<32x128xf32, #tpu.memory_space<vmem>>, vector<32x128xf32>
    %c0_1 = arith.constant 0 : index
    %1 = memref.load %arg1[%c0_1] : memref<2xf32, #tpu.memory_space<smem>>
    %2 = vector.broadcast %1 : f32 to vector<32x128xf32>
    %3 = arith.mulf %0, %2 : vector<32x128xf32>
    %c1 = arith.constant 1 : index
    %4 = memref.load %arg1[%c1] : memref<2xf32, #tpu.memory_space<smem>>
    %5 = vector.broadcast %4 : f32 to vector<32x128xf32>
    %6 = arith.addf %3, %5 : vector<32x128xf32>
    %c0_2 = arith.constant 0 : index
    %c0_3 = arith.constant 0 : index
    %7 = vector.load %arg3[%c0_2, %c0_3] : memref<32x128xf32, #tpu.memory_space<vmem>>, vector<32x128xf32>
    tpu.vector_store %arg3[%c0_2, %c0_3], %6 {strides = array<i32>} : memref<32x128xf32, #tpu.memory_space<vmem>>, vector<32x128xf32>,
    return
  }
  func.func @transform_0(%arg0: i32, %arg1: memref<2xf32, #tpu.memory_space<smem>>) -> (i32, i32) {
    %c0_i32 = arith.constant 0 : i32
    %c0_i32_0 = arith.constant 0 : i32
    return %arg0, %c0_i32 : i32, i32
  }
  func.func @transform_1(%arg0: i32, %arg1: memref<2xf32, #tpu.memory_space<smem>>) -> (i32, i32) {
    %c0_i32 = arith.constant 0 : i32
    %c0_i32_0 = arith.constant 0 : i32
    return %arg0, %c0_i32 : i32, i32
  }
}

</mosaic_0001>

<llo_original>
// kernel: tpu_custom_call.1
$region0: #{tpu_custom_call.1}
  #allocation0 [shape = 'u32[]', space=smem, size = 0x4, offset = 0x4, fixed_abs, tag = 'smem constant byte address 0x4 - core index']
  #allocation1 [shape = 'u32[72,128]{1,0:T(1,128)}', space=vmem, size = 0x9000, scoped, tag = 'internal scratch']
  #allocation2 [shape = 's32[1]{0}', space=sflag, size = 0x4, scoped, tag = 'scoped memory for tpu_custom_call.1']
  #allocation3 [shape = 'u8[512]{0}', space=smem, size = 0x200, scoped, tag = 'prefetched SMEM operand 0']
  %s0 = inlined_call_operand.hbm [shape: f32[2], index: 0, kind: input, shape index: {}]
  %s1 = inlined_call_operand.hbm [shape: f32[32,128], index: 1, kind: input, shape index: {}]
  %s2 = inlined_call_operand.hbm [shape: f32[32,128], index: 2, kind: output, shape index: {}]
  %s3 = sld [smem:[#allocation0]]
  $region18: #{tpu_custom_call.1} parent=0
    _
  %s5 = ssub.s32 1, %s3
  %s6 = scalar_select 0, %s5, %s3
  %s8 = sshll.u32 %s0, 4
  %s9 = int_to_ptr.hbm [resolvable:$true] %s8
  %11 = dma.hbm_to_smem %s9, 16, [#allocation3], [#allocation2]
  %13 = dma.done [#allocation2], 16
  %14 = sfence
  $region1: #{tpu_custom_call.1} parent=0
    #allocation4 [shape = 'u8[16384]{0}', space=vmem, size = 0x4000, scoped, tag = 'input window, operand 1, single buffered']
    #allocation5 [shape = 's32[1]{0}', space=sflag, size = 0x4, scoped, tag = 'scoped memory for tpu_custom_call.1']
    #allocation6 [shape = 's32[1]{0}', space=sflag, size = 0x4, scoped, tag = 'scoped memory for tpu_custom_call.1']
    #allocation7 [shape = 'u8[16384]{0}', space=vmem, size = 0x4000, scoped, tag = 'output window, operand 0, single buffered']
    %15 = vsyncpa [#allocation5], 0
    %16 = vsyncpa [#allocation6], 0
    // Predicated region
    $region2: #{tpu_custom_call.1} parent=1 // pred_check
      _
    $region3: #{tpu_custom_call.1} parent=1 // pred_check_branch
      %18 = sbr.rel (0) target = $region5
    $region4: #{tpu_custom_call.1} parent=1 // pred_region
      %20 = vsyncadd [#allocation5], 0
      %s21 = sshll.u32 %s1, 4
      %s22 = int_to_ptr.hbm [resolvable:$true] %s21
      %s23 = sshll.u32 [#allocation4], 4
      %s24 = int_to_ptr.vmem [resolvable:$true] %s23
      %29 = dma.hbm_to_vmem [thread:$0]  %s22, 512, %s24, [#allocation5], 128, 128, 8
    $region5: #{tpu_custom_call.1} parent=1 // pred_fallthru
      _
    // Predicated region
    $region6: #{tpu_custom_call.1} parent=1 // pred_check
      _
    $region7: #{tpu_custom_call.1} parent=1 // pred_check_branch
      %31 = sbr.rel (0) target = $region9
    $region8: #{tpu_custom_call.1} parent=1 // pred_region
      %33 = dma.done [#allocation5], 512
    $region9: #{tpu_custom_call.1} parent=1 // pred_fallthru
      _
    %v34 = vld [vmem:[#allocation4] sm:$0xff]
    %v35 = vld [vmem:[#allocation4 + $0x8] sm:$0xff]
    %v36 = vld [vmem:[#allocation4 + $0x10] sm:$0xff]
    %v37 = vld [vmem:[#allocation4 + $0x18] sm:$0xff]
    %s38 = sld [smem:[#allocation3]]
    %v39 = vstv %s38
    %v40 = vmul.f32 %v34, %v39
    %v41 = vmul.f32 %v35, %v39
    %v42 = vmul.f32 %v36, %v39
    %v43 = vmul.f32 %v37, %v39
    %s44 = sld [smem:[#allocation3 + $0x1]]
    %v45 = vstv %s44
    %v46 = vadd.f32 %v40, %v45
    %v47 = vadd.f32 %v41, %v45
    %v48 = vadd.f32 %v42, %v45
    %v49 = vadd.f32 %v43, %v45
    %50 = vst [vmem:[#allocation7] sm:$0xff] %v46
    %51 = vst [vmem:[#allocation7 + $0x8] sm:$0xff] %v47
    %52 = vst [vmem:[#allocation7 + $0x10] sm:$0xff] %v48
    %53 = vst [vmem:[#allocation7 + $0x18] sm:$0xff] %v49
    // Predicated region
    $region10: #{tpu_custom_call.1} parent=1 // pred_check
      _
    $region11: #{tpu_custom_call.1} parent=1 // pred_check_branch
      %55 = sbr.rel (0) target = $region13
    $region12: #{tpu_custom_call.1} parent=1 // pred_region
      %57 = vsyncadd [#allocation6], 0
      %s58 = sshll.u32 [#allocation7], 4
      %s59 = int_to_ptr.vmem [resolvable:$true] %s58
      %s60 = sshll.u32 %s2, 4
      %s61 = int_to_ptr.hbm [resolvable:$true] %s60
      %66 = dma.vmem_to_hbm [thread:$0]  %s59, 512, %s61, [#allocation6], 128, 128, 8
    $region13: #{tpu_custom_call.1} parent=1 // pred_fallthru
      _
    // Predicated region
    $region14: #{tpu_custom_call.1} parent=1 // pred_check
      _
    $region15: #{tpu_custom_call.1} parent=1 // pred_check_branch
      %68 = sbr.rel (0) target = $region17
    $region16: #{tpu_custom_call.1} parent=1 // pred_region
      %70 = dma.done [#allocation6], 512
    $region17: #{tpu_custom_call.1} parent=1 // pred_fallthru
      _
    %71 = vsyncpa [#allocation5], 1
    %72 = vsyncpa [#allocation6], 1

</llo_original>
